<compile_context>
chip_gen: v7x
topology: tpu7x:2x2x1
jax: 0.10.0
libtpu: 0.0.40
codegen_flags: <defaults>
</compile_context>

<pallas_src>
import functools

import jax
import jax.numpy as jnp
from jax.experimental import pallas as pl
from jax.experimental.pallas import tpu as pltpu


def _cornn_cell_kernel(hy_ref, hz_ref, x_ref, w_ref, b_ref,
                       hy_out_ref, hz_out_ref, act_ref,
                       *, dt, gamma, epsilon):
    hy = hy_ref[...]
    hz = hz_ref[...]
    x = x_ref[...]

    # Single fused MXU call: [hy | hz | x] @ [Wr^T ; Wf^T ; Wi^T] + b
    lhs = jnp.concatenate([hy, hz, x], axis=-1)
    pre = jnp.dot(lhs, w_ref[...], preferred_element_type=jnp.float32)
    act = jnp.tanh(pre + b_ref[...])

    # hz <- hz + dt * (act - gamma * hy - epsilon * hz);  hy <- hy + dt * hz
    hz_new = hz + dt * (act - gamma * hy - epsilon * hz)
    hy_new = hy + dt * hz_new

    hy_out_ref[...] = hy_new.astype(hy_out_ref.dtype)
    hz_out_ref[...] = hz_new.astype(hz_out_ref.dtype)
    act_ref[...] = act.astype(act_ref.dtype)


def prepare_cornn_params(w_i, b_i, w_r, w_f, dtype=jnp.float32):
    """One-time parameter packing (hoisted out of the per-step path).

    w_i: (n_hid, n_inp), b_i: (n_hid,), w_r/w_f: (n_hid, n_hid) in PyTorch
    nn.Linear layout.  Returns:
      w_cat: (2*n_hid + n_inp, n_hid) = [W_r^T ; W_f^T ; W_i^T]
      bias : (1, n_hid)
    """
    w_cat = jnp.concatenate(
        [jnp.asarray(w_r, dtype).T,
         jnp.asarray(w_f, dtype).T,
         jnp.asarray(w_i, dtype).T], axis=0)
    bias = jnp.asarray(b_i, jnp.float32).reshape(1, -1)
    return w_cat, bias


def cornn_cell(x, hy, hz, w_cat, bias, *, dt, gamma, epsilon, block_b=256):
    """One coRNNCell step.  Returns (hy_new, hz_new, activation)."""
    B, n_inp = x.shape
    n_hid = hy.shape[1]
    assert w_cat.shape == (2 * n_hid + n_inp, n_hid)

    tb = B if B <= block_b else block_b          # batch tile (full B if small)
    grid = (pl.cdiv(B, tb),)

    state_spec = pl.BlockSpec((tb, n_hid), lambda i: (i, 0))
    x_spec = pl.BlockSpec((tb, n_inp), lambda i: (i, 0))
    w_spec = pl.BlockSpec(w_cat.shape, lambda i: (0, 0))   # resident across grid
    b_spec = pl.BlockSpec((1, n_hid), lambda i: (0, 0))

    kernel = functools.partial(_cornn_cell_kernel, dt=float(dt),
                               gamma=float(gamma), epsilon=float(epsilon))

    out_shape = (
        jax.ShapeDtypeStruct((B, n_hid), jnp.float32),  # hy
        jax.ShapeDtypeStruct((B, n_hid), jnp.float32),  # hz
        jax.ShapeDtypeStruct((B, n_hid), jnp.float32),  # activation
    )

    return pl.pallas_call(
        kernel,
        grid=grid,
        in_specs=[state_spec, state_spec, x_spec, w_spec, b_spec],
        out_specs=(state_spec, state_spec, state_spec),
        out_shape=out_shape,
        # hy -> hy_out, hz -> hz_out: in-place state update at the HBM level.
        input_output_aliases={0: 0, 1: 1},
        compiler_params=pltpu.CompilerParams(
            dimension_semantics=("parallel",)),
    )(hy.astype(jnp.float32), hz.astype(jnp.float32), x.astype(jnp.float32),
      w_cat, bias)


if __name__ == "__main__":
    B, n_inp, n_hid = 8, 16, 32
    dt, gamma, epsilon = 0.042, 2.7, 4.7

    key = jax.random.PRNGKey(0)
    kx, khy, khz, kwi, kbi, kwr, kwf = jax.random.split(key, 7)

    x = jax.random.normal(kx, (B, n_inp), jnp.float32)
    hy = jax.random.normal(khy, (B, n_hid), jnp.float32)
    hz = jax.random.normal(khz, (B, n_hid), jnp.float32)

    # Deterministic parameters (nn.Linear-style shapes / init bounds).
    bound_i = 1.0 / (n_inp ** 0.5)
    bound_h = 1.0 / (n_hid ** 0.5)
    w_i = jax.random.uniform(kwi, (n_hid, n_inp), jnp.float32, -bound_i, bound_i)
    b_i = jax.random.uniform(kbi, (n_hid,), jnp.float32, -bound_i, bound_i)
    w_r = jax.random.uniform(kwr, (n_hid, n_hid), jnp.float32, -bound_h, bound_h)
    w_f = jax.random.uniform(kwf, (n_hid, n_hid), jnp.float32, -bound_h, bound_h)

    # Pure-JAX reference of the PyTorch forward (computed first).
    hp = jax.lax.Precision.HIGHEST
    act_ref = jnp.tanh(jnp.dot(hy, w_r.T, precision=hp)
                       + jnp.dot(hz, w_f.T, precision=hp)
                       + jnp.dot(x, w_i.T, precision=hp) + b_i)
    hz_ref = hz + dt * (act_ref - gamma * hy - epsilon * hz)
    hy_ref = hy + dt * hz_ref

    # One-time parameter packing, then the fused Pallas step.
    w_cat, bias = prepare_cornn_params(w_i, b_i, w_r, w_f)
    hy_new, hz_new, act = cornn_cell(x, hy, hz, w_cat, bias,
                                     dt=dt, gamma=gamma, epsilon=epsilon)
    jax.block_until_ready((hy_new, hz_new, act))

    assert jnp.allclose(act, act_ref, atol=1e-4, rtol=1e-4)
    assert jnp.allclose(hz_new, hz_ref, atol=1e-4, rtol=1e-4)
    assert jnp.allclose(hy_new, hy_ref, atol=1e-4, rtol=1e-4)

    print("KERNEL_OK")
</pallas_src>

<mosaic_0001>
module attributes {stable_mosaic.version = 11 : i64} {
  func.func @_cornn_cell_kernel(%arg0: i32, %arg1: memref<8x32xf32, #tpu.memory_space<vmem>>, %arg2: memref<8x32xf32, #tpu.memory_space<vmem>>, %arg3: memref<8x16xf32, #tpu.memory_space<vmem>>, %arg4: memref<80x32xf32, #tpu.memory_space<vmem>>, %arg5: memref<1x32xf32, #tpu.memory_space<vmem>>, %arg6: memref<8x32xf32, #tpu.memory_space<vmem>>, %arg7: memref<8x32xf32, #tpu.memory_space<vmem>>, %arg8: memref<8x32xf32, #tpu.memory_space<vmem>>) attributes {dimension_semantics = [#tpu.dimension_semantics<parallel>], iteration_bounds = array<i64: 1>, scalar_prefetch = 0 : i64, scratch_operands = 0 : i64, tpu.core_type = #tpu.core_type<tc>, window_params = [{transform_indices = @transform_0, window_bounds = array<i64: 8, 32>}, {transform_indices = @transform_1, window_bounds = array<i64: 8, 32>}, {transform_indices = @transform_2, window_bounds = array<i64: 8, 16>}, {pipeline_mode = #tpu.pipeline_mode<synchronous>, transform_indices = @transform_3, window_bounds = array<i64: 80, 32>}, {pipeline_mode = #tpu.pipeline_mode<synchronous>, transform_indices = @transform_4, window_bounds = array<i64: 1, 32>}, {transform_indices = @transform_5, window_bounds = array<i64: 8, 32>}, {transform_indices = @transform_6, window_bounds = array<i64: 8, 32>}, {transform_indices = @transform_7, window_bounds = array<i64: 8, 32>}]} {
    %c0 = arith.constant 0 : index
    %c0_0 = arith.constant 0 : index
    %0 = vector.load %arg1[%c0, %c0_0] : memref<8x32xf32, #tpu.memory_space<vmem>>, vector<8x32xf32>
    %c0_1 = arith.constant 0 : index
    %c0_2 = arith.constant 0 : index
    %1 = vector.load %arg2[%c0_1, %c0_2] : memref<8x32xf32, #tpu.memory_space<vmem>>, vector<8x32xf32>
    %c0_3 = arith.constant 0 : index
    %c0_4 = arith.constant 0 : index
    %2 = vector.load %arg3[%c0_3, %c0_4] : memref<8x16xf32, #tpu.memory_space<vmem>>, vector<8x16xf32>
    %3 = tpu.concatenate %0, %1, %2 in 1 : vector<8x32xf32>, vector<8x32xf32>, vector<8x16xf32> -> vector<8x80xf32>
    %c0_5 = arith.constant 0 : index
    %c0_6 = arith.constant 0 : index
    %4 = vector.load %arg4[%c0_5, %c0_6] : memref<80x32xf32, #tpu.memory_space<vmem>>, vector<80x32xf32>
    %cst = arith.constant dense<0.000000e+00> : vector<8x32xf32>
    %5 = tpu.matmul %3, %4, %cst {dimension_numbers = #tpu.dot_dimension_numbers<[1], [0], [0], [1], [0, 0, 1, 1], [], []>} : vector<8x80xf32>, vector<80x32xf32>, vector<8x32xf32> -> vector<8x32xf32>
    %c0_7 = arith.constant 0 : index
    %c0_8 = arith.constant 0 : index
    %6 = vector.load %arg5[%c0_7, %c0_8] : memref<1x32xf32, #tpu.memory_space<vmem>>, vector<1x32xf32>
    %7 = vector.broadcast %6 : vector<1x32xf32> to vector<8x32xf32>
    %8 = arith.addf %5, %7 : vector<8x32xf32>
    %9 = math.tanh %8 : vector<8x32xf32>
    %cst_9 = arith.constant 2.700000e+00 : f32
    %10 = vector.broadcast %cst_9 : f32 to vector<8x32xf32>
    %11 = arith.mulf %10, %0 : vector<8x32xf32>
    %12 = arith.subf %9, %11 : vector<8x32xf32>
    %cst_10 = arith.constant 4.700000e+00 : f32
    %13 = vector.broadcast %cst_10 : f32 to vector<8x32xf32>
    %14 = arith.mulf %13, %1 : vector<8x32xf32>
    %15 = arith.subf %12, %14 : vector<8x32xf32>
    %cst_11 = arith.constant 4.200000e-02 : f32
    %16 = vector.broadcast %cst_11 : f32 to vector<8x32xf32>
    %17 = arith.mulf %16, %15 : vector<8x32xf32>
    %18 = arith.addf %1, %17 : vector<8x32xf32>
    %cst_12 = arith.constant 4.200000e-02 : f32
    %19 = vector.broadcast %cst_12 : f32 to vector<8x32xf32>
    %20 = arith.mulf %19, %18 : vector<8x32xf32>
    %21 = arith.addf %0, %20 : vector<8x32xf32>
    %c0_13 = arith.constant 0 : index
    %c0_14 = arith.constant 0 : index
    %22 = vector.load %arg6[%c0_13, %c0_14] : memref<8x32xf32, #tpu.memory_space<vmem>>, vector<8x32xf32>
    tpu.vector_store %arg6[%c0_13, %c0_14], %21 {strides = array<i32>} : memref<8x32xf32, #tpu.memory_space<vmem>>, vector<8x32xf32>,
    %c0_15 = arith.constant 0 : index
    %c0_16 = arith.constant 0 : index
    %23 = vector.load %arg7[%c0_15, %c0_16] : memref<8x32xf32, #tpu.memory_space<vmem>>, vector<8x32xf32>
    tpu.vector_store %arg7[%c0_15, %c0_16], %18 {strides = array<i32>} : memref<8x32xf32, #tpu.memory_space<vmem>>, vector<8x32xf32>,
    %c0_17 = arith.constant 0 : index
    %c0_18 = arith.constant 0 : index
    %24 = vector.load %arg8[%c0_17, %c0_18] : memref<8x32xf32, #tpu.memory_space<vmem>>, vector<8x32xf32>
    tpu.vector_store %arg8[%c0_17, %c0_18], %9 {strides = array<i32>} : memref<8x32xf32, #tpu.memory_space<vmem>>, vector<8x32xf32>,
    return
  }
  func.func @transform_0(%arg0: i32) -> (i32, i32) {
    %c0_i32 = arith.constant 0 : i32
    %c0_i32_0 = arith.constant 0 : i32
    return %arg0, %c0_i32 : i32, i32
  }
  func.func @transform_1(%arg0: i32) -> (i32, i32) {
    %c0_i32 = arith.constant 0 : i32
    %c0_i32_0 = arith.constant 0 : i32
    return %arg0, %c0_i32 : i32, i32
  }
  func.func @transform_2(%arg0: i32) -> (i32, i32) {
    %c0_i32 = arith.constant 0 : i32
    %c0_i32_0 = arith.constant 0 : i32
    return %arg0, %c0_i32 : i32, i32
  }
  func.func @transform_3(%arg0: i32) -> (i32, i32) {
    %c0_i32 = arith.constant 0 : i32
    %c0_i32_0 = arith.constant 0 : i32
    %c0_i32_1 = arith.constant 0 : i32
    return %c0_i32, %c0_i32_0 : i32, i32
  }
  func.func @transform_4(%arg0: i32) -> (i32, i32) {
    %c0_i32 = arith.constant 0 : i32
    %c0_i32_0 = arith.constant 0 : i32
    %c0_i32_1 = arith.constant 0 : i32
    return %c0_i32, %c0_i32_0 : i32, i32
  }
  func.func @transform_5(%arg0: i32) -> (i32, i32) {
    %c0_i32 = arith.constant 0 : i32
    %c0_i32_0 = arith.constant 0 : i32
    return %arg0, %c0_i32 : i32, i32
  }
  func.func @transform_6(%arg0: i32) -> (i32, i32) {
    %c0_i32 = arith.constant 0 : i32
    %c0_i32_0 = arith.constant 0 : i32
    return %arg0, %c0_i32 : i32, i32
  }
  func.func @transform_7(%arg0: i32) -> (i32, i32) {
    %c0_i32 = arith.constant 0 : i32
    %c0_i32_0 = arith.constant 0 : i32
    return %arg0, %c0_i32 : i32, i32
  }
}

</mosaic_0001>

<llo_original>
// kernel: tpu_custom_call.1
$region0: #{tpu_custom_call.1}
  #allocation0 [shape = 'u32[]', space=smem, size = 0x4, offset = 0x4, fixed_abs, tag = 'smem constant byte address 0x4 - core index']
  #allocation1 [shape = 'u32[144,128]{1,0:T(1,128)}', space=vmem, size = 0x12000, scoped, tag = 'internal scratch']
  %s0 = inlined_call_operand.hbm [shape: f32[8,32], index: 0, kind: input, shape index: {}, may-alias: {0,5}]
  %s1 = inlined_call_operand.hbm [shape: f32[8,32], index: 1, kind: input, shape index: {}, may-alias: {1,6}]
  %s2 = inlined_call_operand.vmem [shape: f32[8,16], index: 2, kind: input, shape index: {}]
  %s3 = inlined_call_operand.vmem [shape: f32[80,32], index: 3, kind: input, shape index: {}]
  %s4 = inlined_call_operand.vmem [shape: f32[1,32], index: 4, kind: input, shape index: {}]
  %s5 = inlined_call_operand.hbm [shape: f32[8,32], index: 5, kind: output, shape index: {0}, may-alias: {0,5}]
  %s6 = inlined_call_operand.hbm [shape: f32[8,32], index: 6, kind: output, shape index: {1}, may-alias: {1,6}]
  %s7 = inlined_call_operand.hbm [shape: f32[8,32], index: 7, kind: output, shape index: {2}]
  %8 = xla_tuple %s5, %s6, %s7
  %s9 = sld [smem:[#allocation0]]
  $region54: #{tpu_custom_call.1} parent=0
    _
  %s11 = ssub.s32 1, %s9
  %s12 = scalar_select 0, %s11, %s9
  $region1: #{tpu_custom_call.1} parent=0
    #allocation2 [shape = 'u8[4096]{0}', space=vmem, size = 0x1000, scoped, tag = 'input window, operand 0, single buffered']
    #allocation3 [shape = 's32[1]{0}', space=sflag, size = 0x4, scoped, tag = 'scoped memory for tpu_custom_call.1']
    #allocation4 [shape = 's32[1]{0}', space=sflag, size = 0x4, scoped, tag = 'scoped memory for tpu_custom_call.1']
    #allocation5 [shape = 'u8[4096]{0}', space=vmem, size = 0x1000, scoped, tag = 'input window, operand 1, single buffered']
    #allocation6 [shape = 's32[1]{0}', space=sflag, size = 0x4, scoped, tag = 'scoped memory for tpu_custom_call.1']
    #allocation7 [shape = 'u8[4096]{0}', space=vmem, size = 0x1000, scoped, tag = 'output window, operand 0, single buffered']
    #allocation8 [shape = 'u8[4096]{0}', space=vmem, size = 0x1000, scoped, tag = 'output window, operand 1, single buffered']
    #allocation9 [shape = 's32[1]{0}', space=sflag, size = 0x4, scoped, tag = 'scoped memory for tpu_custom_call.1']
    #allocation10 [shape = 'u8[4096]{0}', space=vmem, size = 0x1000, scoped, tag = 'output window, operand 2, single buffered']
    %13 = vsyncpa [#allocation3], 0
    %14 = vsyncpa [#allocation6], 0
    %15 = vsyncpa [#allocation4], 0
    %16 = vsyncpa [#allocation9], 0
    // Predicated region
    $region2: #{tpu_custom_call.1} parent=1 // pred_check
      _
    $region3: #{tpu_custom_call.1} parent=1 // pred_check_branch
      %18 = sbr.rel (0) target = $region5
    $region4: #{tpu_custom_call.1} parent=1 // pred_region
      %s20 = ssub.s32 128, 128
      %21 = vsyncadd [#allocation3], %s20
      %s23 = sshll.u32 [#allocation2], 4
      %s24 = int_to_ptr.vmem [resolvable:$true] %s23
      %26 = dma.hbm_to_vmem [thread:$0]  %s0, 128, %s24, [#allocation3]
    $region5: #{tpu_custom_call.1} parent=1 // pred_fallthru
      _
    // Predicated region
    $region6: #{tpu_custom_call.1} parent=1 // pred_check
      _
    $region7: #{tpu_custom_call.1} parent=1 // pred_check_branch
      %28 = sbr.rel (0) target = $region9
    $region8: #{tpu_custom_call.1} parent=1 // pred_region
      %s30 = ssub.s32 128, 128
      %31 = vsyncadd [#allocation6], %s30
      %s33 = sshll.u32 [#allocation5], 4
      %s34 = int_to_ptr.vmem [resolvable:$true] %s33
      %36 = dma.hbm_to_vmem [thread:$0]  %s1, 128, %s34, [#allocation6]
    $region9: #{tpu_custom_call.1} parent=1 // pred_fallthru
      _
    // Predicated region
    $region10: #{tpu_custom_call.1} parent=1 // pred_check
      _
    $region11: #{tpu_custom_call.1} parent=1 // pred_check_branch
      %38 = sbr.rel (0) target = $region13
    $region12: #{tpu_custom_call.1} parent=1 // pred_region
      _
    $region13: #{tpu_custom_call.1} parent=1 // pred_fallthru
      _
    // Predicated region
    $region14: #{tpu_custom_call.1} parent=1 // pred_check
      _
    $region15: #{tpu_custom_call.1} parent=1 // pred_check_branch
      %40 = sbr.rel (0) target = $region17
    $region16: #{tpu_custom_call.1} parent=1 // pred_region
      _
    $region17: #{tpu_custom_call.1} parent=1 // pred_fallthru
      _
    // Predicated region
    $region18: #{tpu_custom_call.1} parent=1 // pred_check
      _
    $region19: #{tpu_custom_call.1} parent=1 // pred_check_branch
      %42 = sbr.rel (0) target = $region21
    $region20: #{tpu_custom_call.1} parent=1 // pred_region
      _
    $region21: #{tpu_custom_call.1} parent=1 // pred_fallthru
      _
    // Predicated region
    $region22: #{tpu_custom_call.1} parent=1 // pred_check
      _
    $region23: #{tpu_custom_call.1} parent=1 // pred_check_branch
      %44 = sbr.rel (0) target = $region25
    $region24: #{tpu_custom_call.1} parent=1 // pred_region
      %45 = dma.done [#allocation3], 128
    $region25: #{tpu_custom_call.1} parent=1 // pred_fallthru
      _
    // Predicated region
    $region26: #{tpu_custom_call.1} parent=1 // pred_check
      _
    $region27: #{tpu_custom_call.1} parent=1 // pred_check_branch
      %47 = sbr.rel (0) target = $region29
    $region28: #{tpu_custom_call.1} parent=1 // pred_region
      %48 = dma.done [#allocation6], 128
    $region29: #{tpu_custom_call.1} parent=1 // pred_fallthru
      _
    %v49 = vld [vmem:[#allocation2] sm:$0xff]
    %v50 = vld [vmem:[#allocation5] sm:$0xff]
    %v51 = vld [vmem:[%s2] sm:$0xff]
    %53 = vrot.lane.b32.xlu0 %v50, 32
    %v54 = vpop.permute.xlu0 %53
    %57 = vrot.lane.b32.xlu0 %v51, 64
    %v58 = vpop.permute.xlu0 %57
    %vm60 = vcmask 261120
    %v61 = vsel %vm60, %v49, %v54
    %vm62 = vcmask 523264
    %v63 = vsel %vm62, %v61, %v58
    %v64 = vld [vmem:[%s3] sm:$0xff]
    %v65 = vld [vmem:[%s3 + $0x8] sm:$0xff]
    %v66 = vld [vmem:[%s3 + $0x10] sm:$0xff]
    %v67 = vld [vmem:[%s3 + $0x18] sm:$0xff]
    %v68 = vld [vmem:[%s3 + $0x20] sm:$0xff]
    %v69 = vld [vmem:[%s3 + $0x28] sm:$0xff]
    %v70 = vld [vmem:[%s3 + $0x30] sm:$0xff]
    %v71 = vld [vmem:[%s3 + $0x38] sm:$0xff]
    %v72 = vld [vmem:[%s3 + $0x40] sm:$0xff]
    %v73 = vld [vmem:[%s3 + $0x48] sm:$0xff]
    %v74 = vld [vmem:[%s4] sm:$0x1]
    %v76 = vlaneseq
    %v77 = vshrl.u32 %v76, 7
    %v78 = vsub.s32 0, %v77
    %v79 = vrot.slane %v74, %v78
    %vm81 = vcmask 654336
    %v83 = vsel %vm81, %v63, 0
    %85 = vmatprep.subr.mxu0 0.0
    %86 = vmatpush1.msra.mxu0 %v64
    %87 = vmatprep.subr.mxu0 0.0
    %88 = vmatpush1.msra.mxu0 %v65
    %89 = vmatprep.subr.mxu0 0.0
    %90 = vmatpush1.msra.mxu0 %v66
    %91 = vmatprep.subr.mxu0 0.0
    %92 = vmatpush1.msra.mxu0 %v67
    %93 = vmatprep.subr.mxu0 0.0
    %94 = vmatpush1.msra.mxu0 %v68
    %95 = vmatprep.subr.mxu0 0.0
    %96 = vmatpush1.msra.mxu0 %v69
    %97 = vmatprep.subr.mxu0 0.0
    %98 = vmatpush1.msra.mxu0 %v70
    %99 = vmatprep.subr.mxu0 0.0
    %100 = vmatpush1.msra.mxu0 %v71
    %101 = vmatprep.subr.mxu0 0.0
    %102 = vmatpush1.msra.mxu0 %v72
    %103 = vmatprep.subr.mxu0 0.0
    %104 = vmatpush1.msra.mxu0 %v73
    %105 = vmatprep.subr.mxu0 0.0
    %106 = vmatpush1.msra.mxu0 0.0
    %107 = vmatprep.subr.mxu0 0.0
    %108 = vmatpush1.msra.mxu0 0.0
    %109 = vmatprep.subr.mxu0 0.0
    %110 = vmatpush1.msra.mxu0 0.0
    %111 = vmatprep.subr.mxu0 0.0
    %112 = vmatpush1.msra.mxu0 0.0
    %113 = vmatprep.subr.mxu0 0.0
    %114 = vmatpush1.msra.mxu0 0.0
    %115 = vmatprep.subr.mxu0 0.0
    %116 = vmatpush1.msra.mxu0 0.0
    %117 = vmatprep.subr.mxu0 0.0
    %118 = vmatpush1.msra.mxu0 0.0
    %119 = vmatprep.subr.mxu0 0.0
    %120 = vmatpush1.msra.mxu0 0.0
    %121 = vmatprep.subr.mxu0 0.0
    %122 = vmatpush1.msra.mxu0 0.0
    %123 = vmatprep.subr.mxu0 0.0
    %124 = vmatpush1.msra.mxu0 0.0
    %125 = vmatprep.subr.mxu0 0.0
    %126 = vmatpush1.msra.mxu0 0.0
    %127 = vmatprep.subr.mxu0 0.0
    %128 = vmatpush1.msra.mxu0 0.0
    %129 = vmatprep.subr.mxu0 0.0
    %130 = vmatpush1.msra.mxu0 0.0
    %131 = vmatprep.subr.mxu0 0.0
    %132 = vmatpush1.msra.mxu0 0.0
    %133 = vmatprep.subr.mxu0 0.0
    %134 = vmatpush1.msra.mxu0 0.0
    %135 = vmatprep.subr.mxu0 0.0
    %136 = vmatpush1.msra.mxu0 0.0
    %137 = vmatprep.subr.mxu0 0.0
    %138 = vmatpush1.msra.mxu0 0.0
    %139 = vmatprep.subr.mxu0 0.0
    %140 = vmatpush1.msra.mxu0 0.0
    %141 = vmatprep.subr.mxu0 0.0
    %142 = vmatpush1.msra.mxu0 0.0
    %143 = vmatprep.subr.mxu0 0.0
    %144 = vmatpush1.msra.mxu0 0.0
    %145 = vmatprep.subr.mxu0 0.0
    %146 = vmatpush1.msra.mxu0 0.0
    %147 = vmatprep.subr.mxu0 0.0
    %148 = vmatpush1.msra.mxu0 0.0
    %149 = vmatprep.mubr.f32.mxu0 0.0
    %150 = vmatmul.mubr.f32.gmra.mrb[0].mxu0 %v83
    %v151 = vpop.f32.mrb[0].mxu0
    %v152 = vadd.f32 %v79, %v151
    %v153 = vpop.f32.mrb[0].mxu0
    %154 = vdwg.mxu0
    %v155 = vtanh.pop %v152
    %v156 = vmul.f32 %v49, 2.7
    %v157 = vsub.f32 %v155, %v156
    %v158 = vmul.f32 %v50, 4.7
    %v159 = vsub.f32 %v157, %v158
    %v160 = vmul.f32 %v159, 0.042
    %v161 = vadd.f32 %v50, %v160
    %v162 = vmul.f32 %v161, 0.042
    %v163 = vadd.f32 %v49, %v162
    %164 = vst.msk [vmem:[#allocation7] sm:$0xff] %vm60, %v163
    %165 = vst.msk [vmem:[#allocation8] sm:$0xff] %vm60, %v161
    %166 = vst.msk [vmem:[#allocation10] sm:$0xff] %vm60, %v155
    // Predicated region
    $region30: #{tpu_custom_call.1} parent=1 // pred_check
      _
    $region31: #{tpu_custom_call.1} parent=1 // pred_check_branch
      %168 = sbr.rel (0) target = $region33
    $region32: #{tpu_custom_call.1} parent=1 // pred_region
      %s170 = ssub.s32 128, 128
      %171 = vsyncadd [#allocation4], %s170
      %s173 = sshll.u32 [#allocation7], 4
      %s174 = int_to_ptr.vmem [resolvable:$true] %s173
      %176 = dma.vmem_to_hbm [thread:$0]  %s174, 128, %s5, [#allocation4]
    $region33: #{tpu_custom_call.1} parent=1 // pred_fallthru
      _
    // Predicated region
    $region34: #{tpu_custom_call.1} parent=1 // pred_check
      _
    $region35: #{tpu_custom_call.1} parent=1 // pred_check_branch
      %178 = sbr.rel (0) target = $region37
    $region36: #{tpu_custom_call.1} parent=1 // pred_region
      %s180 = ssub.s32 128, 128
      %181 = vsyncadd [#allocation9], %s180
      %s183 = sshll.u32 [#allocation8], 4
      %s184 = int_to_ptr.vmem [resolvable:$true] %s183
      %186 = dma.vmem_to_hbm [thread:$0]  %s184, 128, %s6, [#allocation9]
    $region37: #{tpu_custom_call.1} parent=1 // pred_fallthru
      _
    // Predicated region
    $region38: #{tpu_custom_call.1} parent=1 // pred_check
      _
    $region39: #{tpu_custom_call.1} parent=1 // pred_check_branch
      %188 = sbr.rel (0) target = $region41
    $region40: #{tpu_custom_call.1} parent=1 // pred_region
      %s190 = ssub.s32 128, 128
      %191 = vsyncadd [#allocation9], %s190
      %s193 = sshll.u32 [#allocation10], 4
      %s194 = int_to_ptr.vmem [resolvable:$true] %s193
      %196 = dma.vmem_to_hbm [thread:$0]  %s194, 128, %s7, [#allocation9]
    $region41: #{tpu_custom_call.1} parent=1 // pred_fallthru
      _
    // Predicated region
    $region42: #{tpu_custom_call.1} parent=1 // pred_check
      _
    $region43: #{tpu_custom_call.1} parent=1 // pred_check_branch
      %198 = sbr.rel (0) target = $region45
    $region44: #{tpu_custom_call.1} parent=1 // pred_region
      %199 = dma.done [#allocation4], 128
    $region45: #{tpu_custom_call.1} parent=1 // pred_fallthru
      _
    // Predicated region
    $region46: #{tpu_custom_call.1} parent=1 // pred_check
      _
    $region47: #{tpu_custom_call.1} parent=1 // pred_check_branch
      %201 = sbr.rel (0) target = $region49
    $region48: #{tpu_custom_call.1} parent=1 // pred_region
      %202 = dma.done [#allocation9], 128
    $region49: #{tpu_custom_call.1} parent=1 // pred_fallthru
      _
    // Predicated region
    $region50: #{tpu_custom_call.1} parent=1 // pred_check
      _
    $region51: #{tpu_custom_call.1} parent=1 // pred_check_branch
      %204 = sbr.rel (0) target = $region53
    $region52: #{tpu_custom_call.1} parent=1 // pred_region
      %205 = dma.done [#allocation9], 128
    $region53: #{tpu_custom_call.1} parent=1 // pred_fallthru
      _
    %206 = vsyncpa [#allocation3], 1
    %207 = vsyncpa [#allocation6], 1
    %208 = vsyncpa [#allocation4], 1
    %209 = vsyncpa [#allocation9], 1

</llo_original>
